<compile_context>
chip_gen: v7x
topology: tpu7x:2x2x1
jax: 0.10.0
libtpu: 0.0.40
codegen_flags: <defaults>
</compile_context>

<pallas_src>
import functools

import jax
import jax.numpy as jnp
from jax.experimental import pallas as pl
from jax.experimental.pallas import tpu as pltpu

STATE_DIM = 4
ACTION_DIM = 4
MAX_ACTION = 1.0
H1 = 400
H2 = 300

# Lane-aligned (multiple-of-128) padded feature sizes.
H1_PAD = 512
H2_PAD = 384
ACT_PAD = 128


def _round_up(x, m):
    return ((x + m - 1) // m) * m


def _actor_kernel(x_ref, w1_ref, b1_ref, w2_ref, b2_ref, w3_ref, b3_ref,
                  out_ref, *, max_action, state_dim):
    tb = x_ref.shape[0]
    x = x_ref[...]                                   # (TB, state_dim) f32

    # ---- Layer 1 (K = state_dim = 4) --------------------------------------
    if tb >= 128:
        # Large tiles: one (almost-empty) MXU pass beats 4 cross-lane
        # broadcast-FMAs over ~64 vregs each.  w1 is tiny (4 x 512), so the
        # one-off f32 upcast is negligible and keeps layer-1 numerics in f32.
        acc = jnp.dot(x, w1_ref[...].astype(jnp.float32),
                      preferred_element_type=jnp.float32)
    else:
        # Small tiles: a few VPU broadcast-FMAs, no MXU latency.
        w1 = w1_ref[...].astype(jnp.float32)
        acc = x[:, 0:1] * w1[0:1, :]
        for k in range(1, state_dim):
            acc = acc + x[:, k:k + 1] * w1[k:k + 1, :]
    h1 = jnp.maximum(acc + b1_ref[...], 0.0)          # (TB, H1_PAD) f32

    # ---- Layers 2/3: native bf16 MXU path, f32 accumulation ---------------
    h2 = jnp.dot(h1.astype(jnp.bfloat16), w2_ref[...],
                 preferred_element_type=jnp.float32)
    h2 = jnp.maximum(h2 + b2_ref[...], 0.0)           # (TB, H2_PAD) f32

    h3 = jnp.dot(h2.astype(jnp.bfloat16), w3_ref[...],
                 preferred_element_type=jnp.float32)
    h3 = jnp.tanh(h3 + b3_ref[...])                   # EUP
    if max_action != 1.0:                             # trace-time constant
        h3 = max_action * h3
    out_ref[...] = h3.astype(out_ref.dtype)


def actor_forward(x, params, max_action=MAX_ACTION):
    """x: (B, state_dim) float32. Returns (B, ACTION_DIM) float32."""
    w1, b1, w2, b2, w3, b3 = params
    B, state_dim = x.shape

    # Batch tile: 8-row granularity for small B, up to 512 rows for large B.
    # Grid stays 1 for B <= 512 (no duplicated weight DMA across v7x cores);
    # beyond that the "parallel" axis shards across TensorCores.
    TB = min(512, _round_up(max(B, 1), 8))
    B_pad = _round_up(B, TB)
    if B_pad != B:
        x = jnp.pad(x, ((0, B_pad - B), (0, 0)))

    # Weights/biases use a constant block index -> resident in VMEM across
    # the whole grid (DMA'd once per call, not per batch block).
    rep = lambda shape: pl.BlockSpec(shape, lambda i: (0, 0))

    kernel = functools.partial(_actor_kernel, max_action=float(max_action),
                               state_dim=state_dim)

    weight_bytes = (w1.size + w2.size + w3.size) * 2       # bf16
    bias_bytes = (b1.size + b2.size + b3.size) * 4          # f32
    cost = pl.CostEstimate(
        flops=2 * B_pad * (state_dim * H1_PAD + H1_PAD * H2_PAD
                           + H2_PAD * ACT_PAD),
        transcendentals=B_pad * ACT_PAD,
        bytes_accessed=(weight_bytes + bias_bytes
                        + B_pad * state_dim * 4 + B_pad * ACT_PAD * 4),
    )

    out_pad = pl.pallas_call(
        kernel,
        out_shape=jax.ShapeDtypeStruct((B_pad, ACT_PAD), jnp.float32),
        grid=(B_pad // TB,),
        in_specs=[
            pl.BlockSpec((TB, state_dim), lambda i: (i, 0)),
            rep(w1.shape), rep(b1.shape),
            rep(w2.shape), rep(b2.shape),
            rep(w3.shape), rep(b3.shape),
        ],
        out_specs=pl.BlockSpec((TB, ACT_PAD), lambda i: (i, 0)),
        compiler_params=pltpu.CompilerParams(
            dimension_semantics=("parallel",)),
        cost_estimate=cost,
    )(x, w1, b1, w2, b2, w3, b3)

    return out_pad[:B, :ACTION_DIM]


def init_actor_params(key, state_dim=STATE_DIM, action_dim=ACTION_DIM,
                      weight_dtype=jnp.bfloat16):
    """torch.nn.Linear-style init (U[-1/sqrt(fan_in), +]), stored (in, out),
    zero-padded to lane-aligned shapes, weights cast to bf16 for cheap DMA
    and the MXU's native bf16 path."""
    def linear(key, fan_in, fan_out, fan_in_pad, fan_out_pad):
        kw, kb = jax.random.split(key)
        bound = 1.0 / jnp.sqrt(jnp.float32(fan_in))
        w = jax.random.uniform(kw, (fan_in, fan_out), jnp.float32, -bound, bound)
        b = jax.random.uniform(kb, (1, fan_out), jnp.float32, -bound, bound)
        # Zero padding keeps the math identical: padded h-columns are
        # ReLU(0 + 0) = 0 and hit zero weight rows in the next layer.
        w = jnp.pad(w, ((0, fan_in_pad - fan_in), (0, fan_out_pad - fan_out)))
        b = jnp.pad(b, ((0, 0), (0, fan_out_pad - fan_out)))
        return w.astype(weight_dtype), b  # bias stays f32

    k1, k2, k3 = jax.random.split(key, 3)
    w1, b1 = linear(k1, state_dim, H1, state_dim, H1_PAD)
    w2, b2 = linear(k2, H1, H2, H1_PAD, H2_PAD)
    w3, b3 = linear(k3, H2, action_dim, H2_PAD, ACT_PAD)
    return (w1, b1, w2, b2, w3, b3)


def actor_reference(x, params, max_action=MAX_ACTION):
    """Pure-JAX reference on the same stored parameters, using the same
    bf16-activation / f32-accumulation contraction path as the kernel."""
    w1, b1, w2, b2, w3, b3 = params
    h1 = jnp.maximum(x @ w1.astype(jnp.float32) + b1, 0.0)
    h2 = jnp.dot(h1.astype(jnp.bfloat16), w2,
                 preferred_element_type=jnp.float32) + b2
    h2 = jnp.maximum(h2, 0.0)
    h3 = jnp.dot(h2.astype(jnp.bfloat16), w3,
                 preferred_element_type=jnp.float32) + b3
    out = max_action * jnp.tanh(h3)
    return out[:, :ACTION_DIM]


if __name__ == "__main__":
    key = jax.random.PRNGKey(0)
    k_params, k_x = jax.random.split(key)

    params = init_actor_params(k_params)
    # Small batch of "states" (batch=8, state_dim=4), like Game observations.
    x = jax.random.normal(k_x, (8, STATE_DIM), jnp.float32)

    out = actor_forward(x, params)
    out = jax.block_until_ready(out)

    ref = actor_reference(x, params)
    assert out.shape == (8, ACTION_DIM)
    assert jnp.allclose(out, ref, atol=1e-3, rtol=1e-3), "mismatch vs reference"

    print("KERNEL_OK")
</pallas_src>

<mosaic_0001>
module attributes {stable_mosaic.version = 11 : i64} {
  func.func @_actor_kernel(%arg0: i32, %arg1: memref<8x4xf32, #tpu.memory_space<vmem>>, %arg2: memref<4x512xbf16, #tpu.memory_space<vmem>>, %arg3: memref<1x512xf32, #tpu.memory_space<vmem>>, %arg4: memref<512x384xbf16, #tpu.memory_space<vmem>>, %arg5: memref<1x384xf32, #tpu.memory_space<vmem>>, %arg6: memref<384x128xbf16, #tpu.memory_space<vmem>>, %arg7: memref<1x128xf32, #tpu.memory_space<vmem>>, %arg8: memref<8x128xf32, #tpu.memory_space<vmem>>) attributes {dimension_semantics = [#tpu.dimension_semantics<parallel>], iteration_bounds = array<i64: 1>, scalar_prefetch = 0 : i64, scratch_operands = 0 : i64, tpu.core_type = #tpu.core_type<tc>, window_params = [{transform_indices = @transform_0, window_bounds = array<i64: 8, 4>}, {pipeline_mode = #tpu.pipeline_mode<synchronous>, transform_indices = @transform_1, window_bounds = array<i64: 4, 512>}, {pipeline_mode = #tpu.pipeline_mode<synchronous>, transform_indices = @transform_2, window_bounds = array<i64: 1, 512>}, {pipeline_mode = #tpu.pipeline_mode<synchronous>, transform_indices = @transform_3, window_bounds = array<i64: 512, 384>}, {pipeline_mode = #tpu.pipeline_mode<synchronous>, transform_indices = @transform_4, window_bounds = array<i64: 1, 384>}, {pipeline_mode = #tpu.pipeline_mode<synchronous>, transform_indices = @transform_5, window_bounds = array<i64: 384, 128>}, {pipeline_mode = #tpu.pipeline_mode<synchronous>, transform_indices = @transform_6, window_bounds = array<i64: 1, 128>}, {transform_indices = @transform_7, window_bounds = array<i64: 8, 128>}]} {
    %c0 = arith.constant 0 : index
    %c0_0 = arith.constant 0 : index
    %0 = vector.load %arg1[%c0, %c0_0] : memref<8x4xf32, #tpu.memory_space<vmem>>, vector<8x4xf32>
    %c0_1 = arith.constant 0 : index
    %c0_2 = arith.constant 0 : index
    %1 = vector.load %arg2[%c0_1, %c0_2] : memref<4x512xbf16, #tpu.memory_space<vmem>>, vector<4x512xbf16>
    %2 = arith.extf %1 : vector<4x512xbf16> to vector<4x512xf32>
    %3 = vector.extract_strided_slice %0 {offsets = [0, 0], sizes = [8, 1], strides = [1, 1]} : vector<8x4xf32> to vector<8x1xf32>
    %4 = vector.extract_strided_slice %2 {offsets = [0, 0], sizes = [1, 512], strides = [1, 1]} : vector<4x512xf32> to vector<1x512xf32>
    %5 = vector.broadcast %3 : vector<8x1xf32> to vector<8x512xf32>
    %6 = vector.broadcast %4 : vector<1x512xf32> to vector<8x512xf32>
    %7 = arith.mulf %5, %6 : vector<8x512xf32>
    %8 = vector.extract_strided_slice %0 {offsets = [0, 1], sizes = [8, 1], strides = [1, 1]} : vector<8x4xf32> to vector<8x1xf32>
    %9 = vector.extract_strided_slice %2 {offsets = [1, 0], sizes = [1, 512], strides = [1, 1]} : vector<4x512xf32> to vector<1x512xf32>
    %10 = vector.broadcast %8 : vector<8x1xf32> to vector<8x512xf32>
    %11 = vector.broadcast %9 : vector<1x512xf32> to vector<8x512xf32>
    %12 = arith.mulf %10, %11 : vector<8x512xf32>
    %13 = arith.addf %7, %12 : vector<8x512xf32>
    %14 = vector.extract_strided_slice %0 {offsets = [0, 2], sizes = [8, 1], strides = [1, 1]} : vector<8x4xf32> to vector<8x1xf32>
    %15 = vector.extract_strided_slice %2 {offsets = [2, 0], sizes = [1, 512], strides = [1, 1]} : vector<4x512xf32> to vector<1x512xf32>
    %16 = vector.broadcast %14 : vector<8x1xf32> to vector<8x512xf32>
    %17 = vector.broadcast %15 : vector<1x512xf32> to vector<8x512xf32>
    %18 = arith.mulf %16, %17 : vector<8x512xf32>
    %19 = arith.addf %13, %18 : vector<8x512xf32>
    %20 = vector.extract_strided_slice %0 {offsets = [0, 3], sizes = [8, 1], strides = [1, 1]} : vector<8x4xf32> to vector<8x1xf32>
    %21 = vector.extract_strided_slice %2 {offsets = [3, 0], sizes = [1, 512], strides = [1, 1]} : vector<4x512xf32> to vector<1x512xf32>
    %22 = vector.broadcast %20 : vector<8x1xf32> to vector<8x512xf32>
    %23 = vector.broadcast %21 : vector<1x512xf32> to vector<8x512xf32>
    %24 = arith.mulf %22, %23 : vector<8x512xf32>
    %25 = arith.addf %19, %24 : vector<8x512xf32>
    %c0_3 = arith.constant 0 : index
    %c0_4 = arith.constant 0 : index
    %26 = vector.load %arg3[%c0_3, %c0_4] : memref<1x512xf32, #tpu.memory_space<vmem>>, vector<1x512xf32>
    %27 = vector.broadcast %26 : vector<1x512xf32> to vector<8x512xf32>
    %28 = arith.addf %25, %27 : vector<8x512xf32>
    %cst = arith.constant 0.000000e+00 : f32
    %29 = vector.broadcast %cst : f32 to vector<8x512xf32>
    %30 = arith.maximumf %28, %29 : vector<8x512xf32>
    %31 = arith.truncf %30 : vector<8x512xf32> to vector<8x512xbf16>
    %c0_5 = arith.constant 0 : index
    %c0_6 = arith.constant 0 : index
    %32 = vector.load %arg4[%c0_5, %c0_6] : memref<512x384xbf16, #tpu.memory_space<vmem>>, vector<512x384xbf16>
    %cst_7 = arith.constant dense<0.000000e+00> : vector<8x384xf32>
    %33 = tpu.matmul %31, %32, %cst_7 {dimension_numbers = #tpu.dot_dimension_numbers<[1], [0], [0], [1], [0, 0, 1, 1], [], []>} : vector<8x512xbf16>, vector<512x384xbf16>, vector<8x384xf32> -> vector<8x384xf32>
    %c0_8 = arith.constant 0 : index
    %c0_9 = arith.constant 0 : index
    %34 = vector.load %arg5[%c0_8, %c0_9] : memref<1x384xf32, #tpu.memory_space<vmem>>, vector<1x384xf32>
    %35 = vector.broadcast %34 : vector<1x384xf32> to vector<8x384xf32>
    %36 = arith.addf %33, %35 : vector<8x384xf32>
    %cst_10 = arith.constant 0.000000e+00 : f32
    %37 = vector.broadcast %cst_10 : f32 to vector<8x384xf32>
    %38 = arith.maximumf %36, %37 : vector<8x384xf32>
    %39 = arith.truncf %38 : vector<8x384xf32> to vector<8x384xbf16>
    %c0_11 = arith.constant 0 : index
    %c0_12 = arith.constant 0 : index
    %40 = vector.load %arg6[%c0_11, %c0_12] : memref<384x128xbf16, #tpu.memory_space<vmem>>, vector<384x128xbf16>
    %cst_13 = arith.constant dense<0.000000e+00> : vector<8x128xf32>
    %41 = tpu.matmul %39, %40, %cst_13 {dimension_numbers = #tpu.dot_dimension_numbers<[1], [0], [0], [1], [0, 0, 1, 1], [], []>} : vector<8x384xbf16>, vector<384x128xbf16>, vector<8x128xf32> -> vector<8x128xf32>
    %c0_14 = arith.constant 0 : index
    %c0_15 = arith.constant 0 : index
    %42 = vector.load %arg7[%c0_14, %c0_15] : memref<1x128xf32, #tpu.memory_space<vmem>>, vector<1x128xf32>
    %43 = vector.broadcast %42 : vector<1x128xf32> to vector<8x128xf32>
    %44 = arith.addf %41, %43 : vector<8x128xf32>
    %45 = math.tanh %44 : vector<8x128xf32>
    %c0_16 = arith.constant 0 : index
    %c0_17 = arith.constant 0 : index
    %46 = vector.load %arg8[%c0_16, %c0_17] : memref<8x128xf32, #tpu.memory_space<vmem>>, vector<8x128xf32>
    tpu.vector_store %arg8[%c0_16, %c0_17], %45 {strides = array<i32>} : memref<8x128xf32, #tpu.memory_space<vmem>>, vector<8x128xf32>,
    return
  }
  func.func @transform_0(%arg0: i32) -> (i32, i32) {
    %c0_i32 = arith.constant 0 : i32
    %c0_i32_0 = arith.constant 0 : i32
    return %arg0, %c0_i32 : i32, i32
  }
  func.func @transform_1(%arg0: i32) -> (i32, i32) {
    %c0_i32 = arith.constant 0 : i32
    %c0_i32_0 = arith.constant 0 : i32
    %c0_i32_1 = arith.constant 0 : i32
    return %c0_i32, %c0_i32_0 : i32, i32
  }
  func.func @transform_2(%arg0: i32) -> (i32, i32) {
    %c0_i32 = arith.constant 0 : i32
    %c0_i32_0 = arith.constant 0 : i32
    %c0_i32_1 = arith.constant 0 : i32
    return %c0_i32, %c0_i32_0 : i32, i32
  }
  func.func @transform_3(%arg0: i32) -> (i32, i32) {
    %c0_i32 = arith.constant 0 : i32
    %c0_i32_0 = arith.constant 0 : i32
    %c0_i32_1 = arith.constant 0 : i32
    return %c0_i32, %c0_i32_0 : i32, i32
  }
  func.func @transform_4(%arg0: i32) -> (i32, i32) {
    %c0_i32 = arith.constant 0 : i32
    %c0_i32_0 = arith.constant 0 : i32
    %c0_i32_1 = arith.constant 0 : i32
    return %c0_i32, %c0_i32_0 : i32, i32
  }
  func.func @transform_5(%arg0: i32) -> (i32, i32) {
    %c0_i32 = arith.constant 0 : i32
    %c0_i32_0 = arith.constant 0 : i32
    %c0_i32_1 = arith.constant 0 : i32
    return %c0_i32, %c0_i32_0 : i32, i32
  }
  func.func @transform_6(%arg0: i32) -> (i32, i32) {
    %c0_i32 = arith.constant 0 : i32
    %c0_i32_0 = arith.constant 0 : i32
    %c0_i32_1 = arith.constant 0 : i32
    return %c0_i32, %c0_i32_0 : i32, i32
  }
  func.func @transform_7(%arg0: i32) -> (i32, i32) {
    %c0_i32 = arith.constant 0 : i32
    %c0_i32_0 = arith.constant 0 : i32
    return %arg0, %c0_i32 : i32, i32
  }
}

</mosaic_0001>

<llo_original>
// kernel: tpu_custom_call.1
$region0: #{tpu_custom_call.1}
  #allocation0 [shape = 'u32[]', space=smem, size = 0x4, offset = 0x4, fixed_abs, tag = 'smem constant byte address 0x4 - core index']
  #allocation1 [shape = 'u32[144,128]{1,0:T(1,128)}', space=vmem, size = 0x12000, scoped, tag = 'internal scratch']
  %s0 = inlined_call_operand.vmem [shape: f32[8,4], index: 0, kind: input, shape index: {}]
  %s1 = inlined_call_operand.vmem [shape: bf16[4,512], index: 1, kind: input, shape index: {}]
  %s2 = inlined_call_operand.vmem [shape: f32[1,512], index: 2, kind: input, shape index: {}]
  %s3 = inlined_call_operand.hbm [shape: bf16[512,384], index: 3, kind: input, shape index: {}]
  %s4 = inlined_call_operand.vmem [shape: f32[1,384], index: 4, kind: input, shape index: {}]
  %s5 = inlined_call_operand.hbm [shape: bf16[384,128], index: 5, kind: input, shape index: {}]
  %s6 = inlined_call_operand.vmem [shape: f32[1,128], index: 6, kind: input, shape index: {}]
  %s7 = inlined_call_operand.hbm [shape: f32[8,128], index: 7, kind: output, shape index: {}]
  %s8 = sld [smem:[#allocation0]]
  $region46: #{tpu_custom_call.1} parent=0
    _
  %s10 = ssub.s32 1, %s8
  %s11 = scalar_select 0, %s10, %s8
  $region1: #{tpu_custom_call.1} parent=0
    #allocation2 [shape = 'u8[393216]{0}', space=vmem, size = 0x60000, scoped, tag = 'input window, operand 3, single buffered']
    #allocation3 [shape = 's32[1]{0}', space=sflag, size = 0x4, scoped, tag = 'scoped memory for tpu_custom_call.1']
    #allocation4 [shape = 's32[1]{0}', space=sflag, size = 0x4, scoped, tag = 'scoped memory for tpu_custom_call.1']
    #allocation5 [shape = 'u8[98304]{0}', space=vmem, size = 0x18000, scoped, tag = 'input window, operand 5, single buffered']
    #allocation6 [shape = 's32[1]{0}', space=sflag, size = 0x4, scoped, tag = 'scoped memory for tpu_custom_call.1']
    #allocation7 [shape = 'u8[4096]{0}', space=vmem, size = 0x1000, scoped, tag = 'output window, operand 0, single buffered']
    %12 = vsyncpa [#allocation3], 0
    %13 = vsyncpa [#allocation6], 0
    %14 = vsyncpa [#allocation4], 0
    // Predicated region
    $region2: #{tpu_custom_call.1} parent=1 // pred_check
      _
    $region3: #{tpu_custom_call.1} parent=1 // pred_check_branch
      %16 = sbr.rel (0) target = $region5
    $region4: #{tpu_custom_call.1} parent=1 // pred_region
      _
    $region5: #{tpu_custom_call.1} parent=1 // pred_fallthru
      _
    // Predicated region
    $region6: #{tpu_custom_call.1} parent=1 // pred_check
      _
    $region7: #{tpu_custom_call.1} parent=1 // pred_check_branch
      %18 = sbr.rel (0) target = $region9
    $region8: #{tpu_custom_call.1} parent=1 // pred_region
      _
    $region9: #{tpu_custom_call.1} parent=1 // pred_fallthru
      _
    // Predicated region
    $region10: #{tpu_custom_call.1} parent=1 // pred_check
      _
    $region11: #{tpu_custom_call.1} parent=1 // pred_check_branch
      %20 = sbr.rel (0) target = $region13
    $region12: #{tpu_custom_call.1} parent=1 // pred_region
      _
    $region13: #{tpu_custom_call.1} parent=1 // pred_fallthru
      _
    // Predicated region
    $region14: #{tpu_custom_call.1} parent=1 // pred_check
      _
    $region15: #{tpu_custom_call.1} parent=1 // pred_check_branch
      %22 = sbr.rel (0) target = $region17
    $region16: #{tpu_custom_call.1} parent=1 // pred_region
      %s24 = ssub.s32 12288, 12288
      %25 = vsyncadd [#allocation3], %s24
      %s26 = sshll.u32 [#allocation2], 4
      %s27 = int_to_ptr.vmem [resolvable:$true] %s26
      %32 = dma.hbm_to_vmem [thread:$0]  %s3, 12288, %s27, [#allocation3], 192, 192, 12
    $region17: #{tpu_custom_call.1} parent=1 // pred_fallthru
      _
    // Predicated region
    $region18: #{tpu_custom_call.1} parent=1 // pred_check
      _
    $region19: #{tpu_custom_call.1} parent=1 // pred_check_branch
      %34 = sbr.rel (0) target = $region21
    $region20: #{tpu_custom_call.1} parent=1 // pred_region
      _
    $region21: #{tpu_custom_call.1} parent=1 // pred_fallthru
      _
    // Predicated region
    $region22: #{tpu_custom_call.1} parent=1 // pred_check
      _
    $region23: #{tpu_custom_call.1} parent=1 // pred_check_branch
      %36 = sbr.rel (0) target = $region25
    $region24: #{tpu_custom_call.1} parent=1 // pred_region
      %s38 = ssub.s32 3072, 3072
      %39 = vsyncadd [#allocation6], %s38
      %s40 = sshll.u32 [#allocation5], 4
      %s41 = int_to_ptr.vmem [resolvable:$true] %s40
      %46 = dma.hbm_to_vmem [thread:$0]  %s5, 3072, %s41, [#allocation6], 64, 64, 4
    $region25: #{tpu_custom_call.1} parent=1 // pred_fallthru
      _
    // Predicated region
    $region26: #{tpu_custom_call.1} parent=1 // pred_check
      _
    $region27: #{tpu_custom_call.1} parent=1 // pred_check_branch
      %48 = sbr.rel (0) target = $region29
    $region28: #{tpu_custom_call.1} parent=1 // pred_region
      _
    $region29: #{tpu_custom_call.1} parent=1 // pred_fallthru
      _
    // Predicated region
    $region30: #{tpu_custom_call.1} parent=1 // pred_check
      _
    $region31: #{tpu_custom_call.1} parent=1 // pred_check_branch
      %50 = sbr.rel (0) target = $region33
    $region32: #{tpu_custom_call.1} parent=1 // pred_region
      %51 = dma.done [#allocation3], 12288
    $region33: #{tpu_custom_call.1} parent=1 // pred_fallthru
      _
    // Predicated region
    $region34: #{tpu_custom_call.1} parent=1 // pred_check
      _
    $region35: #{tpu_custom_call.1} parent=1 // pred_check_branch
      %53 = sbr.rel (0) target = $region37
    $region36: #{tpu_custom_call.1} parent=1 // pred_region
      %54 = dma.done [#allocation6], 3072
    $region37: #{tpu_custom_call.1} parent=1 // pred_fallthru
      _
    %v56 = vld [vmem:[%s0] sm:$0xff]
    %v57 = vld [vmem:[%s1] sm:$0xff]
    %v58 = vunpack.c.l.bf16 %v57
    %v59 = vunpack.c.h.bf16 %v57
    %61 = vset.pattern.permute.xlu0 0
    %62 = vperm.xlu0 %61, %v56
    %v63 = vpop.permute.xlu0 %62
    %v67 = vlaneseq
    %v68 = vshrl.u32 %v67, 7
    %v69 = vsub.s32 0, %v68
    %v70 = vrot.slane %v58, %v69
    %v71 = vlaneseq
    %v72 = vshrl.u32 %v71, 7
    %v73 = vsub.s32 4, %v72
    %v74 = vrot.slane %v58, %v73
    %v75 = vlaneseq
    %v76 = vshrl.u32 %v75, 7
    %v77 = vsub.s32 0, %v76
    %v78 = vrot.slane %v59, %v77
    %v79 = vlaneseq
    %v80 = vshrl.u32 %v79, 7
    %v81 = vsub.s32 4, %v80
    %v82 = vrot.slane %v59, %v81
    %v87 = vlaneseq
    %v88 = vshrl.u32 %v87, 7
    %v89 = vsub.s32 0, %v88
    %v90 = vrot.slane %v70, %v89
    %v91 = vlaneseq
    %v92 = vshrl.u32 %v91, 7
    %v93 = vsub.s32 0, %v92
    %v94 = vrot.slane %v74, %v93
    %v95 = vlaneseq
    %v96 = vshrl.u32 %v95, 7
    %v97 = vsub.s32 0, %v96
    %v98 = vrot.slane %v78, %v97
    %v99 = vlaneseq
    %v100 = vshrl.u32 %v99, 7
    %v101 = vsub.s32 0, %v100
    %v102 = vrot.slane %v82, %v101
    %v103 = vmul.f32 %v63, %v90
    %v104 = vmul.f32 %v63, %v94
    %v105 = vmul.f32 %v63, %v98
    %v106 = vmul.f32 %v63, %v102
    %107 = vset.pattern.permute.xlu0 1
    %108 = vperm.xlu0 %107, %v56
    %v109 = vpop.permute.xlu0 %108
    %v111 = vlaneseq
    %v112 = vshrl.u32 %v111, 7
    %v113 = vsub.s32 1, %v112
    %v114 = vrot.slane %v58, %v113
    %v115 = vlaneseq
    %v116 = vshrl.u32 %v115, 7
    %v117 = vsub.s32 5, %v116
    %v118 = vrot.slane %v58, %v117
    %v119 = vlaneseq
    %v120 = vshrl.u32 %v119, 7
    %v121 = vsub.s32 1, %v120
    %v122 = vrot.slane %v59, %v121
    %v123 = vlaneseq
    %v124 = vshrl.u32 %v123, 7
    %v125 = vsub.s32 5, %v124
    %v126 = vrot.slane %v59, %v125
    %v131 = vlaneseq
    %v132 = vshrl.u32 %v131, 7
    %v133 = vsub.s32 1, %v132
    %v134 = vrot.slane %v114, %v133
    %v135 = vlaneseq
    %v136 = vshrl.u32 %v135, 7
    %v137 = vsub.s32 1, %v136
    %v138 = vrot.slane %v118, %v137
    %v139 = vlaneseq
    %v140 = vshrl.u32 %v139, 7
    %v141 = vsub.s32 1, %v140
    %v142 = vrot.slane %v122, %v141
    %v143 = vlaneseq
    %v144 = vshrl.u32 %v143, 7
    %v145 = vsub.s32 1, %v144
    %v146 = vrot.slane %v126, %v145
    %v147 = vmul.f32 %v109, %v134
    %v148 = vmul.f32 %v109, %v138
    %v149 = vmul.f32 %v109, %v142
    %v150 = vmul.f32 %v109, %v146
    %v151 = vadd.f32 %v103, %v147
    %v152 = vadd.f32 %v104, %v148
    %v153 = vadd.f32 %v105, %v149
    %v154 = vadd.f32 %v106, %v150
    %155 = vset.pattern.permute.xlu0 2
    %156 = vperm.xlu0 %155, %v56
    %v157 = vpop.permute.xlu0 %156
    %v159 = vlaneseq
    %v160 = vshrl.u32 %v159, 7
    %v161 = vsub.s32 2, %v160
    %v162 = vrot.slane %v58, %v161
    %v163 = vlaneseq
    %v164 = vshrl.u32 %v163, 7
    %v165 = vsub.s32 6, %v164
    %v166 = vrot.slane %v58, %v165
    %v167 = vlaneseq
    %v168 = vshrl.u32 %v167, 7
    %v169 = vsub.s32 2, %v168
    %v170 = vrot.slane %v59, %v169
    %v171 = vlaneseq
    %v172 = vshrl.u32 %v171, 7
    %v173 = vsub.s32 6, %v172
    %v174 = vrot.slane %v59, %v173
    %v179 = vlaneseq
    %v180 = vshrl.u32 %v179, 7
    %v181 = vsub.s32 2, %v180
    %v182 = vrot.slane %v162, %v181
    %v183 = vlaneseq
    %v184 = vshrl.u32 %v183, 7
    %v185 = vsub.s32 2, %v184
    %v186 = vrot.slane %v166, %v185
    %v187 = vlaneseq
    %v188 = vshrl.u32 %v187, 7
    %v189 = vsub.s32 2, %v188
    %v190 = vrot.slane %v170, %v189
    %v191 = vlaneseq
    %v192 = vshrl.u32 %v191, 7
    %v193 = vsub.s32 2, %v192
    %v194 = vrot.slane %v174, %v193
    %v195 = vmul.f32 %v157, %v182
    %v196 = vmul.f32 %v157, %v186
    %v197 = vmul.f32 %v157, %v190
    %v198 = vmul.f32 %v157, %v194
    %v199 = vadd.f32 %v151, %v195
    %v200 = vadd.f32 %v152, %v196
    %v201 = vadd.f32 %v153, %v197
    %v202 = vadd.f32 %v154, %v198
    %203 = vset.pattern.permute.xlu0 3
    %204 = vperm.xlu0 %203, %v56
    %v205 = vpop.permute.xlu0 %204
    %v207 = vlaneseq
    %v208 = vshrl.u32 %v207, 7
    %v209 = vsub.s32 3, %v208
    %v210 = vrot.slane %v58, %v209
    %v211 = vlaneseq
    %v212 = vshrl.u32 %v211, 7
    %v213 = vsub.s32 7, %v212
    %v214 = vrot.slane %v58, %v213
    %v215 = vlaneseq
    %v216 = vshrl.u32 %v215, 7
    %v217 = vsub.s32 3, %v216
    %v218 = vrot.slane %v59, %v217
    %v219 = vlaneseq
    %v220 = vshrl.u32 %v219, 7
    %v221 = vsub.s32 7, %v220
    %v222 = vrot.slane %v59, %v221
    %v227 = vlaneseq
    %v228 = vshrl.u32 %v227, 7
    %v229 = vsub.s32 3, %v228
    %v230 = vrot.slane %v210, %v229
    %v231 = vlaneseq
    %v232 = vshrl.u32 %v231, 7
    %v233 = vsub.s32 3, %v232
    %v234 = vrot.slane %v214, %v233
    %v235 = vlaneseq
    %v236 = vshrl.u32 %v235, 7
    %v237 = vsub.s32 3, %v236
    %v238 = vrot.slane %v218, %v237
    %v239 = vlaneseq
    %v240 = vshrl.u32 %v239, 7
    %v241 = vsub.s32 3, %v240
    %v242 = vrot.slane %v222, %v241
    %v243 = vmul.f32 %v205, %v230
    %v244 = vmul.f32 %v205, %v234
    %v245 = vmul.f32 %v205, %v238
    %v246 = vmul.f32 %v205, %v242
    %v247 = vadd.f32 %v199, %v243
    %v248 = vadd.f32 %v200, %v244
    %v249 = vadd.f32 %v201, %v245
    %v250 = vadd.f32 %v202, %v246
    %v251 = vld [vmem:[%s2] sm:$0xf]
    %v253 = vlaneseq
    %v254 = vshrl.u32 %v253, 7
    %v255 = vsub.s32 0, %v254
    %v256 = vrot.slane %v251, %v255
    %v257 = vlaneseq
    %v258 = vshrl.u32 %v257, 7
    %v259 = vsub.s32 1, %v258
    %v260 = vrot.slane %v251, %v259
    %v261 = vlaneseq
    %v262 = vshrl.u32 %v261, 7
    %v263 = vsub.s32 2, %v262
    %v264 = vrot.slane %v251, %v263
    %v265 = vlaneseq
    %v266 = vshrl.u32 %v265, 7
    %v267 = vsub.s32 3, %v266
    %v268 = vrot.slane %v251, %v267
    %v273 = vadd.f32 %v247, %v256
    %v274 = vadd.f32 %v248, %v260
    %v275 = vadd.f32 %v249, %v264
    %v276 = vadd.f32 %v250, %v268
    %v277 = vmax.f32 %v273, 0.0
    %v278 = vmax.f32 %v274, 0.0
    %v279 = vmax.f32 %v275, 0.0
    %v280 = vmax.f32 %v276, 0.0
    %v281 = vpack.c.bf16 %v277, %v277
    %v282 = vpack.c.bf16 %v278, %v278
    %v283 = vpack.c.bf16 %v279, %v279
    %v284 = vpack.c.bf16 %v280, %v280
    %v285 = vld [vmem:[#allocation2] sm:$0xff]
    %v286 = vld [vmem:[#allocation2 + $0x8] sm:$0xf]
    %v287 = vld [vmem:[#allocation2 + $0xc] sm:$0xff]
    %v288 = vld [vmem:[#allocation2 + $0x14] sm:$0xf]
    %v289 = vld [vmem:[#allocation2 + $0x18] sm:$0xff]
    %v290 = vld [vmem:[#allocation2 + $0x20] sm:$0xf]
    %v291 = vld [vmem:[#allocation2 + $0x24] sm:$0xff]
    %v292 = vld [vmem:[#allocation2 + $0x2c] sm:$0xf]
    %v293 = vld [vmem:[#allocation2 + $0x30] sm:$0xff]
    %v294 = vld [vmem:[#allocation2 + $0x38] sm:$0xf]
    %v295 = vld [vmem:[#allocation2 + $0x3c] sm:$0xff]
    %v296 = vld [vmem:[#allocation2 + $0x44] sm:$0xf]
    %v297 = vld [vmem:[#allocation2 + $0x48] sm:$0xff]
    %v298 = vld [vmem:[#allocation2 + $0x50] sm:$0xf]
    %v299 = vld [vmem:[#allocation2 + $0x54] sm:$0xff]
    %v300 = vld [vmem:[#allocation2 + $0x5c] sm:$0xf]
    %v301 = vld [vmem:[#allocation2 + $0x60] sm:$0xff]
    %v302 = vld [vmem:[#allocation2 + $0x68] sm:$0xf]
    %v303 = vld [vmem:[#allocation2 + $0x6c] sm:$0xff]
    %v304 = vld [vmem:[#allocation2 + $0x74] sm:$0xf]
    %v305 = vld [vmem:[#allocation2 + $0x78] sm:$0xff]
    %v306 = vld [vmem:[#allocation2 + $0x80] sm:$0xf]
    %v307 = vld [vmem:[#allocation2 + $0x84] sm:$0xff]
    %v308 = vld [vmem:[#allocation2 + $0x8c] sm:$0xf]
    %v309 = vld [vmem:[#allocation2 + $0x90] sm:$0xff]
    %v310 = vld [vmem:[#allocation2 + $0x98] sm:$0xf]
    %v311 = vld [vmem:[#allocation2 + $0x9c] sm:$0xff]
    %v312 = vld [vmem:[#allocation2 + $0xa4] sm:$0xf]
    %v313 = vld [vmem:[#allocation2 + $0xa8] sm:$0xff]
    %v314 = vld [vmem:[#allocation2 + $0xb0] sm:$0xf]
    %v315 = vld [vmem:[#allocation2 + $0xb4] sm:$0xff]
    %v316 = vld [vmem:[#allocation2 + $0xbc] sm:$0xf]
    %v317 = vld [vmem:[#allocation2 + $0xc0] sm:$0xff]
    %v318 = vld [vmem:[#allocation2 + $0xc8] sm:$0xf]
    %v319 = vld [vmem:[#allocation2 + $0xcc] sm:$0xff]
    %v320 = vld [vmem:[#allocation2 + $0xd4] sm:$0xf]
    %v321 = vld [vmem:[#allocation2 + $0xd8] sm:$0xff]
    %v322 = vld [vmem:[#allocation2 + $0xe0] sm:$0xf]
    %v323 = vld [vmem:[#allocation2 + $0xe4] sm:$0xff]
    %v324 = vld [vmem:[#allocation2 + $0xec] sm:$0xf]
    %v325 = vld [vmem:[#allocation2 + $0xf0] sm:$0xff]
    %v326 = vld [vmem:[#allocation2 + $0xf8] sm:$0xf]
    %v327 = vld [vmem:[#allocation2 + $0xfc] sm:$0xff]
    %v328 = vld [vmem:[#allocation2 + $0x104] sm:$0xf]
    %v329 = vld [vmem:[#allocation2 + $0x108] sm:$0xff]
    %v330 = vld [vmem:[#allocation2 + $0x110] sm:$0xf]
    %v331 = vld [vmem:[#allocation2 + $0x114] sm:$0xff]
    %v332 = vld [vmem:[#allocation2 + $0x11c] sm:$0xf]
    %v333 = vld [vmem:[#allocation2 + $0x120] sm:$0xff]
    %v334 = vld [vmem:[#allocation2 + $0x128] sm:$0xf]
    %v335 = vld [vmem:[#allocation2 + $0x12c] sm:$0xff]
    %v336 = vld [vmem:[#allocation2 + $0x134] sm:$0xf]
    %v337 = vld [vmem:[#allocation2 + $0x138] sm:$0xff]
    %v338 = vld [vmem:[#allocation2 + $0x140] sm:$0xf]
    %v339 = vld [vmem:[#allocation2 + $0x144] sm:$0xff]
    %v340 = vld [vmem:[#allocation2 + $0x14c] sm:$0xf]
    %v341 = vld [vmem:[#allocation2 + $0x150] sm:$0xff]
    %v342 = vld [vmem:[#allocation2 + $0x158] sm:$0xf]
    %v343 = vld [vmem:[#allocation2 + $0x15c] sm:$0xff]
    %v344 = vld [vmem:[#allocation2 + $0x164] sm:$0xf]
    %v345 = vld [vmem:[#allocation2 + $0x168] sm:$0xff]
    %v346 = vld [vmem:[#allocation2 + $0x170] sm:$0xf]
    %v347 = vld [vmem:[#allocation2 + $0x174] sm:$0xff]
    %v348 = vld [vmem:[#allocation2 + $0x17c] sm:$0xf]
    %v349 = vld [vmem:[#allocation2 + $0x180] sm:$0xff]
    %v350 = vld [vmem:[#allocation2 + $0x188] sm:$0xf]
    %v351 = vld [vmem:[#allocation2 + $0x18c] sm:$0xff]
    %v352 = vld [vmem:[#allocation2 + $0x194] sm:$0xf]
    %v353 = vld [vmem:[#allocation2 + $0x198] sm:$0xff]
    %v354 = vld [vmem:[#allocation2 + $0x1a0] sm:$0xf]
    %v355 = vld [vmem:[#allocation2 + $0x1a4] sm:$0xff]
    %v356 = vld [vmem:[#allocation2 + $0x1ac] sm:$0xf]
    %v357 = vld [vmem:[#allocation2 + $0x1b0] sm:$0xff]
    %v358 = vld [vmem:[#allocation2 + $0x1b8] sm:$0xf]
    %v359 = vld [vmem:[#allocation2 + $0x1bc] sm:$0xff]
    %v360 = vld [vmem:[#allocation2 + $0x1c4] sm:$0xf]
    %v361 = vld [vmem:[#allocation2 + $0x1c8] sm:$0xff]
    %v362 = vld [vmem:[#allocation2 + $0x1d0] sm:$0xf]
    %v363 = vld [vmem:[#allocation2 + $0x1d4] sm:$0xff]
    %v364 = vld [vmem:[#allocation2 + $0x1dc] sm:$0xf]
    %v365 = vld [vmem:[#allocation2 + $0x1e0] sm:$0xff]
    %v366 = vld [vmem:[#allocation2 + $0x1e8] sm:$0xf]
    %v367 = vld [vmem:[#allocation2 + $0x1ec] sm:$0xff]
    %v368 = vld [vmem:[#allocation2 + $0x1f4] sm:$0xf]
    %v369 = vld [vmem:[#allocation2 + $0x1f8] sm:$0xff]
    %v370 = vld [vmem:[#allocation2 + $0x200] sm:$0xf]
    %v371 = vld [vmem:[#allocation2 + $0x204] sm:$0xff]
    %v372 = vld [vmem:[#allocation2 + $0x20c] sm:$0xf]
    %v373 = vld [vmem:[#allocation2 + $0x210] sm:$0xff]
    %v374 = vld [vmem:[#allocation2 + $0x218] sm:$0xf]
    %v375 = vld [vmem:[#allocation2 + $0x21c] sm:$0xff]
    %v376 = vld [vmem:[#allocation2 + $0x224] sm:$0xf]
    %v377 = vld [vmem:[#allocation2 + $0x228] sm:$0xff]
    %v378 = vld [vmem:[#allocation2 + $0x230] sm:$0xf]
    %v379 = vld [vmem:[#allocation2 + $0x234] sm:$0xff]
    %v380 = vld [vmem:[#allocation2 + $0x23c] sm:$0xf]
    %v381 = vld [vmem:[#allocation2 + $0x240] sm:$0xff]
    %v382 = vld [vmem:[#allocation2 + $0x248] sm:$0xf]
    %v383 = vld [vmem:[#allocation2 + $0x24c] sm:$0xff]
    %v384 = vld [vmem:[#allocation2 + $0x254] sm:$0xf]
    %v385 = vld [vmem:[#allocation2 + $0x258] sm:$0xff]
    %v386 = vld [vmem:[#allocation2 + $0x260] sm:$0xf]
    %v387 = vld [vmem:[#allocation2 + $0x264] sm:$0xff]
    %v388 = vld [vmem:[#allocation2 + $0x26c] sm:$0xf]
    %v389 = vld [vmem:[#allocation2 + $0x270] sm:$0xff]
    %v390 = vld [vmem:[#allocation2 + $0x278] sm:$0xf]
    %v391 = vld [vmem:[#allocation2 + $0x27c] sm:$0xff]
    %v392 = vld [vmem:[#allocation2 + $0x284] sm:$0xf]
    %v393 = vld [vmem:[#allocation2 + $0x288] sm:$0xff]
    %v394 = vld [vmem:[#allocation2 + $0x290] sm:$0xf]
    %v395 = vld [vmem:[#allocation2 + $0x294] sm:$0xff]
    %v396 = vld [vmem:[#allocation2 + $0x29c] sm:$0xf]
    %v397 = vld [vmem:[#allocation2 + $0x2a0] sm:$0xff]
    %v398 = vld [vmem:[#allocation2 + $0x2a8] sm:$0xf]
    %v399 = vld [vmem:[#allocation2 + $0x2ac] sm:$0xff]
    %v400 = vld [vmem:[#allocation2 + $0x2b4] sm:$0xf]
    %v401 = vld [vmem:[#allocation2 + $0x2b8] sm:$0xff]
    %v402 = vld [vmem:[#allocation2 + $0x2c0] sm:$0xf]
    %v403 = vld [vmem:[#allocation2 + $0x2c4] sm:$0xff]
    %v404 = vld [vmem:[#allocation2 + $0x2cc] sm:$0xf]
    %v405 = vld [vmem:[#allocation2 + $0x2d0] sm:$0xff]
    %v406 = vld [vmem:[#allocation2 + $0x2d8] sm:$0xf]
    %v407 = vld [vmem:[#allocation2 + $0x2dc] sm:$0xff]
    %v408 = vld [vmem:[#allocation2 + $0x2e4] sm:$0xf]
    %v409 = vld [vmem:[#allocation2 + $0x2e8] sm:$0xff]
    %v410 = vld [vmem:[#allocation2 + $0x2f0] sm:$0xf]
    %v411 = vld [vmem:[#allocation2 + $0x2f4] sm:$0xff]
    %v412 = vld [vmem:[#allocation2 + $0x2fc] sm:$0xf]
    %v413 = vld [vmem:[%s4] sm:$0x7]
    %v415 = vlaneseq
    %v416 = vshrl.u32 %v415, 7
    %v417 = vsub.s32 0, %v416
    %v418 = vrot.slane %v413, %v417
    %v419 = vlaneseq
    %v420 = vshrl.u32 %v419, 7
    %v421 = vsub.s32 1, %v420
    %v422 = vrot.slane %v413, %v421
    %v423 = vlaneseq
    %v424 = vshrl.u32 %v423, 7
    %v425 = vsub.s32 2, %v424
    %v426 = vrot.slane %v413, %v425
    %v558 = vunpack.c.l.b16 %v285
    %v559 = vunpack.c.h.b16 %v285
    %v560 = vunpack.c.l.b16 %v286
    %v561 = vunpack.c.l.b16 %v287
    %v562 = vunpack.c.h.b16 %v287
    %v563 = vunpack.c.l.b16 %v288
    %v564 = vunpack.c.l.b16 %v289
    %v565 = vunpack.c.h.b16 %v289
    %v566 = vunpack.c.l.b16 %v290
    %v567 = vunpack.c.l.b16 %v291
    %v568 = vunpack.c.h.b16 %v291
    %v569 = vunpack.c.l.b16 %v292
    %v570 = vunpack.c.l.b16 %v293
    %v571 = vunpack.c.h.b16 %v293
    %v572 = vunpack.c.l.b16 %v294
    %v573 = vunpack.c.l.b16 %v295
    %v574 = vunpack.c.h.b16 %v295
    %v575 = vunpack.c.l.b16 %v296
    %v576 = vunpack.c.l.b16 %v297
    %v577 = vunpack.c.h.b16 %v297
    %v578 = vunpack.c.l.b16 %v298
    %v579 = vunpack.c.l.b16 %v299
    %v580 = vunpack.c.h.b16 %v299
    %v581 = vunpack.c.l.b16 %v300
    %v582 = vunpack.c.l.b16 %v301
    %v583 = vunpack.c.h.b16 %v301
    %v584 = vunpack.c.l.b16 %v302
    %v585 = vunpack.c.l.b16 %v303
    %v586 = vunpack.c.h.b16 %v303
    %v587 = vunpack.c.l.b16 %v304
    %v588 = vunpack.c.l.b16 %v305
    %v589 = vunpack.c.h.b16 %v305
    %v590 = vunpack.c.l.b16 %v306
    %v591 = vunpack.c.l.b16 %v307
    %v592 = vunpack.c.h.b16 %v307
    %v593 = vunpack.c.l.b16 %v308
    %v594 = vunpack.c.l.b16 %v309
    %v595 = vunpack.c.h.b16 %v309
    %v596 = vunpack.c.l.b16 %v310
    %v597 = vunpack.c.l.b16 %v311
    %v598 = vunpack.c.h.b16 %v311
    %v599 = vunpack.c.l.b16 %v312
    %v600 = vunpack.c.l.b16 %v313
    %v601 = vunpack.c.h.b16 %v313
    %v602 = vunpack.c.l.b16 %v314
    %v603 = vunpack.c.l.b16 %v315
    %v604 = vunpack.c.h.b16 %v315
    %v605 = vunpack.c.l.b16 %v316
    %v606 = vunpack.c.l.b16 %v317
    %v607 = vunpack.c.h.b16 %v317
    %v608 = vunpack.c.l.b16 %v318
    %v609 = vunpack.c.l.b16 %v319
    %v610 = vunpack.c.h.b16 %v319
    %v611 = vunpack.c.l.b16 %v320
    %v612 = vunpack.c.l.b16 %v321
    %v613 = vunpack.c.h.b16 %v321
    %v614 = vunpack.c.l.b16 %v322
    %v615 = vunpack.c.l.b16 %v323
    %v616 = vunpack.c.h.b16 %v323
    %v617 = vunpack.c.l.b16 %v324
    %v618 = vunpack.c.l.b16 %v325
    %v619 = vunpack.c.h.b16 %v325
    %v620 = vunpack.c.l.b16 %v326
    %v621 = vunpack.c.l.b16 %v327
    %v622 = vunpack.c.h.b16 %v327
    %v623 = vunpack.c.l.b16 %v328
    %v624 = vunpack.c.l.b16 %v329
    %v625 = vunpack.c.h.b16 %v329
    %v626 = vunpack.c.l.b16 %v330
    %v627 = vunpack.c.l.b16 %v331
    %v628 = vunpack.c.h.b16 %v331
    %v629 = vunpack.c.l.b16 %v332
    %v630 = vunpack.c.l.b16 %v333
    %v631 = vunpack.c.h.b16 %v333
    %v632 = vunpack.c.l.b16 %v334
    %v633 = vunpack.c.l.b16 %v335
    %v634 = vunpack.c.h.b16 %v335
    %v635 = vunpack.c.l.b16 %v336
    %v636 = vunpack.c.l.b16 %v337
    %v637 = vunpack.c.h.b16 %v337
    %v638 = vunpack.c.l.b16 %v338
    %v639 = vunpack.c.l.b16 %v339
    %v640 = vunpack.c.h.b16 %v339
    %v641 = vunpack.c.l.b16 %v340
    %v642 = vunpack.c.l.b16 %v341
    %v643 = vunpack.c.h.b16 %v341
    %v644 = vunpack.c.l.b16 %v342
    %v645 = vunpack.c.l.b16 %v343
    %v646 = vunpack.c.h.b16 %v343
    %v647 = vunpack.c.l.b16 %v344
    %v648 = vunpack.c.l.b16 %v345
    %v649 = vunpack.c.h.b16 %v345
    %v650 = vunpack.c.l.b16 %v346
    %v651 = vunpack.c.l.b16 %v347
    %v652 = vunpack.c.h.b16 %v347
    %v653 = vunpack.c.l.b16 %v348
    %v654 = vunpack.c.l.b16 %v349
    %v655 = vunpack.c.h.b16 %v349
    %v656 = vunpack.c.l.b16 %v350
    %v657 = vunpack.c.l.b16 %v351
    %v658 = vunpack.c.h.b16 %v351
    %v659 = vunpack.c.l.b16 %v352
    %v660 = vunpack.c.l.b16 %v353
    %v661 = vunpack.c.h.b16 %v353
    %v662 = vunpack.c.l.b16 %v354
    %v663 = vunpack.c.l.b16 %v355
    %v664 = vunpack.c.h.b16 %v355
    %v665 = vunpack.c.l.b16 %v356
    %v666 = vunpack.c.l.b16 %v357
    %v667 = vunpack.c.h.b16 %v357
    %v668 = vunpack.c.l.b16 %v358
    %v669 = vunpack.c.l.b16 %v359
    %v670 = vunpack.c.h.b16 %v359
    %v671 = vunpack.c.l.b16 %v360
    %v672 = vunpack.c.l.b16 %v361
    %v673 = vunpack.c.h.b16 %v361
    %v674 = vunpack.c.l.b16 %v362
    %v675 = vunpack.c.l.b16 %v363
    %v676 = vunpack.c.h.b16 %v363
    %v677 = vunpack.c.l.b16 %v364
    %v678 = vunpack.c.l.b16 %v365
    %v679 = vunpack.c.h.b16 %v365
    %v680 = vunpack.c.l.b16 %v366
    %v681 = vunpack.c.l.b16 %v367
    %v682 = vunpack.c.h.b16 %v367
    %v683 = vunpack.c.l.b16 %v368
    %v684 = vunpack.c.l.b16 %v369
    %v685 = vunpack.c.h.b16 %v369
    %v686 = vunpack.c.l.b16 %v370
    %v687 = vunpack.c.l.b16 %v371
    %v688 = vunpack.c.h.b16 %v371
    %v689 = vunpack.c.l.b16 %v372
    %v690 = vunpack.c.l.b16 %v373
    %v691 = vunpack.c.h.b16 %v373
    %v692 = vunpack.c.l.b16 %v374
    %v693 = vunpack.c.l.b16 %v375
    %v694 = vunpack.c.h.b16 %v375
    %v695 = vunpack.c.l.b16 %v376
    %v696 = vunpack.c.l.b16 %v377
    %v697 = vunpack.c.h.b16 %v377
    %v698 = vunpack.c.l.b16 %v378
    %v699 = vunpack.c.l.b16 %v379
    %v700 = vunpack.c.h.b16 %v379
    %v701 = vunpack.c.l.b16 %v380
    %v702 = vunpack.c.l.b16 %v381
    %v703 = vunpack.c.h.b16 %v381
    %v704 = vunpack.c.l.b16 %v382
    %v705 = vunpack.c.l.b16 %v383
    %v706 = vunpack.c.h.b16 %v383
    %v707 = vunpack.c.l.b16 %v384
    %v708 = vunpack.c.l.b16 %v385
    %v709 = vunpack.c.h.b16 %v385
    %v710 = vunpack.c.l.b16 %v386
    %v711 = vunpack.c.l.b16 %v387
    %v712 = vunpack.c.h.b16 %v387
    %v713 = vunpack.c.l.b16 %v388
    %v714 = vunpack.c.l.b16 %v389
    %v715 = vunpack.c.h.b16 %v389
    %v716 = vunpack.c.l.b16 %v390
    %v717 = vunpack.c.l.b16 %v391
    %v718 = vunpack.c.h.b16 %v391
    %v719 = vunpack.c.l.b16 %v392
    %v720 = vunpack.c.l.b16 %v393
    %v721 = vunpack.c.h.b16 %v393
    %v722 = vunpack.c.l.b16 %v394
    %v723 = vunpack.c.l.b16 %v395
    %v724 = vunpack.c.h.b16 %v395
    %v725 = vunpack.c.l.b16 %v396
    %v726 = vunpack.c.l.b16 %v397
    %v727 = vunpack.c.h.b16 %v397
    %v728 = vunpack.c.l.b16 %v398
    %v729 = vunpack.c.l.b16 %v399
    %v730 = vunpack.c.h.b16 %v399
    %v731 = vunpack.c.l.b16 %v400
    %v732 = vunpack.c.l.b16 %v401
    %v733 = vunpack.c.h.b16 %v401
    %v734 = vunpack.c.l.b16 %v402
    %v735 = vunpack.c.l.b16 %v403
    %v736 = vunpack.c.h.b16 %v403
    %v737 = vunpack.c.l.b16 %v404
    %v738 = vunpack.c.l.b16 %v405
    %v739 = vunpack.c.h.b16 %v405
    %v740 = vunpack.c.l.b16 %v406
    %v741 = vunpack.c.l.b16 %v407
    %v742 = vunpack.c.h.b16 %v407
    %v743 = vunpack.c.l.b16 %v408
    %v744 = vunpack.c.l.b16 %v409
    %v745 = vunpack.c.h.b16 %v409
    %v746 = vunpack.c.l.b16 %v410
    %v747 = vunpack.c.l.b16 %v411
    %v748 = vunpack.c.h.b16 %v411
    %v749 = vunpack.c.l.b16 %v412
    %v750 = vpack.c.b16 %v561, %v558
    %v751 = vpack.c.b16 %v562, %v559
    %v752 = vpack.c.b16 %v563, %v560
    %v753 = vpack.c.b16 %v567, %v564
    %v754 = vpack.c.b16 %v568, %v565
    %v755 = vpack.c.b16 %v569, %v566
    %v756 = vpack.c.b16 %v573, %v570
    %v757 = vpack.c.b16 %v574, %v571
    %v758 = vpack.c.b16 %v575, %v572
    %v759 = vpack.c.b16 %v579, %v576
    %v760 = vpack.c.b16 %v580, %v577
    %v761 = vpack.c.b16 %v581, %v578
    %v762 = vpack.c.b16 %v585, %v582
    %v763 = vpack.c.b16 %v586, %v583
    %v764 = vpack.c.b16 %v587, %v584
    %v765 = vpack.c.b16 %v591, %v588
    %v766 = vpack.c.b16 %v592, %v589
    %v767 = vpack.c.b16 %v593, %v590
    %v768 = vpack.c.b16 %v597, %v594
    %v769 = vpack.c.b16 %v598, %v595
    %v770 = vpack.c.b16 %v599, %v596
    %v771 = vpack.c.b16 %v603, %v600
    %v772 = vpack.c.b16 %v604, %v601
    %v773 = vpack.c.b16 %v605, %v602
    %v774 = vpack.c.b16 %v609, %v606
    %v775 = vpack.c.b16 %v610, %v607
    %v776 = vpack.c.b16 %v611, %v608
    %v777 = vpack.c.b16 %v615, %v612
    %v778 = vpack.c.b16 %v616, %v613
    %v779 = vpack.c.b16 %v617, %v614
    %v780 = vpack.c.b16 %v621, %v618
    %v781 = vpack.c.b16 %v622, %v619
    %v782 = vpack.c.b16 %v623, %v620
    %v783 = vpack.c.b16 %v627, %v624
    %v784 = vpack.c.b16 %v628, %v625
    %v785 = vpack.c.b16 %v629, %v626
    %v786 = vpack.c.b16 %v633, %v630
    %v787 = vpack.c.b16 %v634, %v631
    %v788 = vpack.c.b16 %v635, %v632
    %v789 = vpack.c.b16 %v639, %v636
    %v790 = vpack.c.b16 %v640, %v637
    %v791 = vpack.c.b16 %v641, %v638
    %v792 = vpack.c.b16 %v645, %v642
    %v793 = vpack.c.b16 %v646, %v643
    %v794 = vpack.c.b16 %v647, %v644
    %v795 = vpack.c.b16 %v651, %v648
    %v796 = vpack.c.b16 %v652, %v649
    %v797 = vpack.c.b16 %v653, %v650
    %v798 = vpack.c.b16 %v657, %v654
    %v799 = vpack.c.b16 %v658, %v655
    %v800 = vpack.c.b16 %v659, %v656
    %v801 = vpack.c.b16 %v663, %v660
    %v802 = vpack.c.b16 %v664, %v661
    %v803 = vpack.c.b16 %v665, %v662
    %v804 = vpack.c.b16 %v669, %v666
    %v805 = vpack.c.b16 %v670, %v667
    %v806 = vpack.c.b16 %v671, %v668
    %v807 = vpack.c.b16 %v675, %v672
    %v808 = vpack.c.b16 %v676, %v673
    %v809 = vpack.c.b16 %v677, %v674
    %v810 = vpack.c.b16 %v681, %v678
    %v811 = vpack.c.b16 %v682, %v679
    %v812 = vpack.c.b16 %v683, %v680
    %v813 = vpack.c.b16 %v687, %v684
    %v814 = vpack.c.b16 %v688, %v685
    %v815 = vpack.c.b16 %v689, %v686
    %v816 = vpack.c.b16 %v693, %v690
    %v817 = vpack.c.b16 %v694, %v691
    %v818 = vpack.c.b16 %v695, %v692
    %v819 = vpack.c.b16 %v699, %v696
    %v820 = vpack.c.b16 %v700, %v697
    %v821 = vpack.c.b16 %v701, %v698
    %v822 = vpack.c.b16 %v705, %v702
    %v823 = vpack.c.b16 %v706, %v703
    %v824 = vpack.c.b16 %v707, %v704
    %v825 = vpack.c.b16 %v711, %v708
    %v826 = vpack.c.b16 %v712, %v709
    %v827 = vpack.c.b16 %v713, %v710
    %v828 = vpack.c.b16 %v717, %v714
    %v829 = vpack.c.b16 %v718, %v715
    %v830 = vpack.c.b16 %v719, %v716
    %v831 = vpack.c.b16 %v723, %v720
    %v832 = vpack.c.b16 %v724, %v721
    %v833 = vpack.c.b16 %v725, %v722
    %v834 = vpack.c.b16 %v729, %v726
    %v835 = vpack.c.b16 %v730, %v727
    %v836 = vpack.c.b16 %v731, %v728
    %v837 = vpack.c.b16 %v735, %v732
    %v838 = vpack.c.b16 %v736, %v733
    %v839 = vpack.c.b16 %v737, %v734
    %v840 = vpack.c.b16 %v741, %v738
    %v841 = vpack.c.b16 %v742, %v739
    %v842 = vpack.c.b16 %v743, %v740
    %v843 = vpack.c.b16 %v747, %v744
    %v844 = vpack.c.b16 %v748, %v745
    %v845 = vpack.c.b16 %v749, %v746
    %942 = vmatprep.subr.bf16.mxu0 %v751
    %943 = vmatpush1.bf16.msra.mxu0 %v750
    %944 = vmatprep.subr.bf16.mxu0 %v754
    %945 = vmatpush1.bf16.msra.mxu0 %v753
    %946 = vmatprep.subr.bf16.mxu0 %v757
    %947 = vmatpush1.bf16.msra.mxu0 %v756
    %948 = vmatprep.subr.bf16.mxu0 %v760
    %949 = vmatpush1.bf16.msra.mxu0 %v759
    %950 = vmatprep.subr.bf16.mxu0 %v763
    %951 = vmatpush1.bf16.msra.mxu0 %v762
    %952 = vmatprep.subr.bf16.mxu0 %v766
    %953 = vmatpush1.bf16.msra.mxu0 %v765
    %954 = vmatprep.subr.bf16.mxu0 %v769
    %955 = vmatpush1.bf16.msra.mxu0 %v768
    %956 = vmatprep.subr.bf16.mxu0 %v772
    %957 = vmatpush1.bf16.msra.mxu0 %v771
    %958 = vmatprep.subr.bf16.mxu0 %v775
    %959 = vmatpush1.bf16.msra.mxu0 %v774
    %960 = vmatprep.subr.bf16.mxu0 %v778
    %961 = vmatpush1.bf16.msra.mxu0 %v777
    %962 = vmatprep.subr.bf16.mxu0 %v781
    %963 = vmatpush1.bf16.msra.mxu0 %v780
    %964 = vmatprep.subr.bf16.mxu0 %v784
    %965 = vmatpush1.bf16.msra.mxu0 %v783
    %966 = vmatprep.subr.bf16.mxu0 %v787
    %967 = vmatpush1.bf16.msra.mxu0 %v786
    %968 = vmatprep.subr.bf16.mxu0 %v790
    %969 = vmatpush1.bf16.msra.mxu0 %v789
    %970 = vmatprep.subr.bf16.mxu0 %v793
    %971 = vmatpush1.bf16.msra.mxu0 %v792
    %972 = vmatprep.subr.bf16.mxu0 %v796
    %973 = vmatpush1.bf16.msra.mxu0 %v795
    %974 = vmatprep.mubr.bf16.mxu0 %v282
    %975 = vmatmul.mubr.bf16.gmra.mrb[0].mxu0 %v281
    %v976 = vpop.f32.mrb[0].mxu0
    %v977 = vadd.f32 %v418, %v976
    %v978 = vpop.f32.mrb[0].mxu0
    %v979 = vadd.f32 %v422, %v978
    %v980 = vpop.f32.mrb[0].mxu0
    %v981 = vpop.f32.mrb[0].mxu0
    %982 = vdwg.mxu0
    %983 = vmatprep.subr.bf16.mxu0 %v799
    %984 = vmatpush1.bf16.msra.mxu0 %v798
    %985 = vmatprep.subr.bf16.mxu0 %v802
    %986 = vmatpush1.bf16.msra.mxu0 %v801
    %987 = vmatprep.subr.bf16.mxu0 %v805
    %988 = vmatpush1.bf16.msra.mxu0 %v804
    %989 = vmatprep.subr.bf16.mxu0 %v808
    %990 = vmatpush1.bf16.msra.mxu0 %v807
    %991 = vmatprep.subr.bf16.mxu0 %v811
    %992 = vmatpush1.bf16.msra.mxu0 %v810
    %993 = vmatprep.subr.bf16.mxu0 %v814
    %994 = vmatpush1.bf16.msra.mxu0 %v813
    %995 = vmatprep.subr.bf16.mxu0 %v817
    %996 = vmatpush1.bf16.msra.mxu0 %v816
    %997 = vmatprep.subr.bf16.mxu0 %v820
    %998 = vmatpush1.bf16.msra.mxu0 %v819
    %999 = vmatprep.subr.bf16.mxu0 %v823
    %1000 = vmatpush1.bf16.msra.mxu0 %v822
    %1001 = vmatprep.subr.bf16.mxu0 %v826
    %1002 = vmatpush1.bf16.msra.mxu0 %v825
    %1003 = vmatprep.subr.bf16.mxu0 %v829
    %1004 = vmatpush1.bf16.msra.mxu0 %v828
    %1005 = vmatprep.subr.bf16.mxu0 %v832
    %1006 = vmatpush1.bf16.msra.mxu0 %v831
    %1007 = vmatprep.subr.bf16.mxu0 %v835
    %1008 = vmatpush1.bf16.msra.mxu0 %v834
    %1009 = vmatprep.subr.bf16.mxu0 %v838
    %1010 = vmatpush1.bf16.msra.mxu0 %v837
    %1011 = vmatprep.subr.bf16.mxu0 %v841
    %1012 = vmatpush1.bf16.msra.mxu0 %v840
    %1013 = vmatprep.subr.bf16.mxu0 %v844
    %1014 = vmatpush1.bf16.msra.mxu0 %v843
    %1015 = vmatprep.mubr.bf16.mxu0 %v284
    %1016 = vmatmul.mubr.bf16.gmra.mrb[0].mxu0 %v283
    %v1017 = vpop.f32.mrb[0].mxu0
    %v1018 = vadd.f32 %v977, %v1017
    %v1019 = vpop.f32.mrb[0].mxu0
    %v1020 = vadd.f32 %v979, %v1019
    %v1021 = vpop.f32.mrb[0].mxu0
    %v1022 = vpop.f32.mrb[0].mxu0
    %1023 = vdwg.mxu0
    %1024 = vmatprep.subr.bf16.mxu0 0
    %1025 = vmatpush1.bf16.msra.mxu0 %v752
    %1026 = vmatprep.subr.bf16.mxu0 0
    %1027 = vmatpush1.bf16.msra.mxu0 %v755
    %1028 = vmatprep.subr.bf16.mxu0 0
    %1029 = vmatpush1.bf16.msra.mxu0 %v758
    %1030 = vmatprep.subr.bf16.mxu0 0
    %1031 = vmatpush1.bf16.msra.mxu0 %v761
    %1032 = vmatprep.subr.bf16.mxu0 0
    %1033 = vmatpush1.bf16.msra.mxu0 %v764
    %1034 = vmatprep.subr.bf16.mxu0 0
    %1035 = vmatpush1.bf16.msra.mxu0 %v767
    %1036 = vmatprep.subr.bf16.mxu0 0
    %1037 = vmatpush1.bf16.msra.mxu0 %v770
    %1038 = vmatprep.subr.bf16.mxu0 0
    %1039 = vmatpush1.bf16.msra.mxu0 %v773
    %1040 = vmatprep.subr.bf16.mxu0 0
    %1041 = vmatpush1.bf16.msra.mxu0 %v776
    %1042 = vmatprep.subr.bf16.mxu0 0
    %1043 = vmatpush1.bf16.msra.mxu0 %v779
    %1044 = vmatprep.subr.bf16.mxu0 0
    %1045 = vmatpush1.bf16.msra.mxu0 %v782
    %1046 = vmatprep.subr.bf16.mxu0 0
    %1047 = vmatpush1.bf16.msra.mxu0 %v785
    %1048 = vmatprep.subr.bf16.mxu0 0
    %1049 = vmatpush1.bf16.msra.mxu0 %v788
    %1050 = vmatprep.subr.bf16.mxu0 0
    %1051 = vmatpush1.bf16.msra.mxu0 %v791
    %1052 = vmatprep.subr.bf16.mxu0 0
    %1053 = vmatpush1.bf16.msra.mxu0 %v794
    %1054 = vmatprep.subr.bf16.mxu0 0
    %1055 = vmatpush1.bf16.msra.mxu0 %v797
    %1056 = vmatprep.mubr.bf16.mxu0 %v282
    %1057 = vmatmul.mubr.bf16.gmra.mrb[0].mxu0 %v281
    %v1058 = vpop.f32.mrb[0].mxu0
    %v1059 = vadd.f32 %v426, %v1058
    %v1060 = vpop.f32.mrb[0].mxu0
    %v1061 = vpop.f32.mrb[0].mxu0
    %v1062 = vpop.f32.mrb[0].mxu0
    %1063 = vdwg.mxu0
    %1064 = vmatprep.subr.bf16.mxu0 0
    %1065 = vmatpush1.bf16.msra.mxu0 %v800
    %1066 = vmatprep.subr.bf16.mxu0 0
    %1067 = vmatpush1.bf16.msra.mxu0 %v803
    %1068 = vmatprep.subr.bf16.mxu0 0
    %1069 = vmatpush1.bf16.msra.mxu0 %v806
    %1070 = vmatprep.subr.bf16.mxu0 0
    %1071 = vmatpush1.bf16.msra.mxu0 %v809
    %1072 = vmatprep.subr.bf16.mxu0 0
    %1073 = vmatpush1.bf16.msra.mxu0 %v812
    %1074 = vmatprep.subr.bf16.mxu0 0
    %1075 = vmatpush1.bf16.msra.mxu0 %v815
    %1076 = vmatprep.subr.bf16.mxu0 0
    %1077 = vmatpush1.bf16.msra.mxu0 %v818
    %1078 = vmatprep.subr.bf16.mxu0 0
    %1079 = vmatpush1.bf16.msra.mxu0 %v821
    %1080 = vmatprep.subr.bf16.mxu0 0
    %1081 = vmatpush1.bf16.msra.mxu0 %v824
    %1082 = vmatprep.subr.bf16.mxu0 0
    %1083 = vmatpush1.bf16.msra.mxu0 %v827
    %1084 = vmatprep.subr.bf16.mxu0 0
    %1085 = vmatpush1.bf16.msra.mxu0 %v830
    %1086 = vmatprep.subr.bf16.mxu0 0
    %1087 = vmatpush1.bf16.msra.mxu0 %v833
    %1088 = vmatprep.subr.bf16.mxu0 0
    %1089 = vmatpush1.bf16.msra.mxu0 %v836
    %1090 = vmatprep.subr.bf16.mxu0 0
    %1091 = vmatpush1.bf16.msra.mxu0 %v839
    %1092 = vmatprep.subr.bf16.mxu0 0
    %1093 = vmatpush1.bf16.msra.mxu0 %v842
    %1094 = vmatprep.subr.bf16.mxu0 0
    %1095 = vmatpush1.bf16.msra.mxu0 %v845
    %1096 = vmatprep.mubr.bf16.mxu0 %v284
    %1097 = vmatmul.mubr.bf16.gmra.mrb[0].mxu0 %v283
    %v1098 = vpop.f32.mrb[0].mxu0
    %v1099 = vadd.f32 %v1059, %v1098
    %v1100 = vpop.f32.mrb[0].mxu0
    %v1101 = vpop.f32.mrb[0].mxu0
    %v1102 = vpop.f32.mrb[0].mxu0
    %1103 = vdwg.mxu0
    %v1104 = vmax.f32 %v1018, 0.0
    %v1105 = vmax.f32 %v1020, 0.0
    %v1106 = vmax.f32 %v1099, 0.0
    %v1107 = vpack.c.bf16 %v1104, %v1104
    %v1108 = vpack.c.bf16 %v1105, %v1105
    %v1109 = vpack.c.bf16 %v1106, %v1106
    %v1110 = vld [vmem:[#allocation5] sm:$0xf]
    %v1111 = vld [vmem:[#allocation5 + $0x4] sm:$0xf]
    %v1112 = vld [vmem:[#allocation5 + $0x8] sm:$0xf]
    %v1113 = vld [vmem:[#allocation5 + $0xc] sm:$0xf]
    %v1114 = vld [vmem:[#allocation5 + $0x10] sm:$0xf]
    %v1115 = vld [vmem:[#allocation5 + $0x14] sm:$0xf]
    %v1116 = vld [vmem:[#allocation5 + $0x18] sm:$0xf]
    %v1117 = vld [vmem:[#allocation5 + $0x1c] sm:$0xf]
    %v1118 = vld [vmem:[#allocation5 + $0x20] sm:$0xf]
    %v1119 = vld [vmem:[#allocation5 + $0x24] sm:$0xf]
    %v1120 = vld [vmem:[#allocation5 + $0x28] sm:$0xf]
    %v1121 = vld [vmem:[#allocation5 + $0x2c] sm:$0xf]
    %v1122 = vld [vmem:[#allocation5 + $0x30] sm:$0xf]
    %v1123 = vld [vmem:[#allocation5 + $0x34] sm:$0xf]
    %v1124 = vld [vmem:[#allocation5 + $0x38] sm:$0xf]
    %v1125 = vld [vmem:[#allocation5 + $0x3c] sm:$0xf]
    %v1126 = vld [vmem:[#allocation5 + $0x40] sm:$0xf]
    %v1127 = vld [vmem:[#allocation5 + $0x44] sm:$0xf]
    %v1128 = vld [vmem:[#allocation5 + $0x48] sm:$0xf]
    %v1129 = vld [vmem:[#allocation5 + $0x4c] sm:$0xf]
    %v1130 = vld [vmem:[#allocation5 + $0x50] sm:$0xf]
    %v1131 = vld [vmem:[#allocation5 + $0x54] sm:$0xf]
    %v1132 = vld [vmem:[#allocation5 + $0x58] sm:$0xf]
    %v1133 = vld [vmem:[#allocation5 + $0x5c] sm:$0xf]
    %v1134 = vld [vmem:[#allocation5 + $0x60] sm:$0xf]
    %v1135 = vld [vmem:[#allocation5 + $0x64] sm:$0xf]
    %v1136 = vld [vmem:[#allocation5 + $0x68] sm:$0xf]
    %v1137 = vld [vmem:[#allocation5 + $0x6c] sm:$0xf]
    %v1138 = vld [vmem:[#allocation5 + $0x70] sm:$0xf]
    %v1139 = vld [vmem:[#allocation5 + $0x74] sm:$0xf]
    %v1140 = vld [vmem:[#allocation5 + $0x78] sm:$0xf]
    %v1141 = vld [vmem:[#allocation5 + $0x7c] sm:$0xf]
    %v1142 = vld [vmem:[#allocation5 + $0x80] sm:$0xf]
    %v1143 = vld [vmem:[#allocation5 + $0x84] sm:$0xf]
    %v1144 = vld [vmem:[#allocation5 + $0x88] sm:$0xf]
    %v1145 = vld [vmem:[#allocation5 + $0x8c] sm:$0xf]
    %v1146 = vld [vmem:[#allocation5 + $0x90] sm:$0xf]
    %v1147 = vld [vmem:[#allocation5 + $0x94] sm:$0xf]
    %v1148 = vld [vmem:[#allocation5 + $0x98] sm:$0xf]
    %v1149 = vld [vmem:[#allocation5 + $0x9c] sm:$0xf]
    %v1150 = vld [vmem:[#allocation5 + $0xa0] sm:$0xf]
    %v1151 = vld [vmem:[#allocation5 + $0xa4] sm:$0xf]
    %v1152 = vld [vmem:[#allocation5 + $0xa8] sm:$0xf]
    %v1153 = vld [vmem:[#allocation5 + $0xac] sm:$0xf]
    %v1154 = vld [vmem:[#allocation5 + $0xb0] sm:$0xf]
    %v1155 = vld [vmem:[#allocation5 + $0xb4] sm:$0xf]
    %v1156 = vld [vmem:[#allocation5 + $0xb8] sm:$0xf]
    %v1157 = vld [vmem:[#allocation5 + $0xbc] sm:$0xf]
    %v1158 = vld [vmem:[%s6] sm:$0x1]
    %v1160 = vlaneseq
    %v1161 = vshrl.u32 %v1160, 7
    %v1162 = vsub.s32 0, %v1161
    %v1163 = vrot.slane %v1158, %v1162
    %v1213 = vunpack.c.l.b16 %v1110
    %v1214 = vunpack.c.l.b16 %v1111
    %v1215 = vunpack.c.l.b16 %v1112
    %v1216 = vunpack.c.l.b16 %v1113
    %v1217 = vunpack.c.l.b16 %v1114
    %v1218 = vunpack.c.l.b16 %v1115
    %v1219 = vunpack.c.l.b16 %v1116
    %v1220 = vunpack.c.l.b16 %v1117
    %v1221 = vunpack.c.l.b16 %v1118
    %v1222 = vunpack.c.l.b16 %v1119
    %v1223 = vunpack.c.l.b16 %v1120
    %v1224 = vunpack.c.l.b16 %v1121
    %v1225 = vunpack.c.l.b16 %v1122
    %v1226 = vunpack.c.l.b16 %v1123
    %v1227 = vunpack.c.l.b16 %v1124
    %v1228 = vunpack.c.l.b16 %v1125
    %v1229 = vunpack.c.l.b16 %v1126
    %v1230 = vunpack.c.l.b16 %v1127
    %v1231 = vunpack.c.l.b16 %v1128
    %v1232 = vunpack.c.l.b16 %v1129
    %v1233 = vunpack.c.l.b16 %v1130
    %v1234 = vunpack.c.l.b16 %v1131
    %v1235 = vunpack.c.l.b16 %v1132
    %v1236 = vunpack.c.l.b16 %v1133
    %v1237 = vunpack.c.l.b16 %v1134
    %v1238 = vunpack.c.l.b16 %v1135
    %v1239 = vunpack.c.l.b16 %v1136
    %v1240 = vunpack.c.l.b16 %v1137
    %v1241 = vunpack.c.l.b16 %v1138
    %v1242 = vunpack.c.l.b16 %v1139
    %v1243 = vunpack.c.l.b16 %v1140
    %v1244 = vunpack.c.l.b16 %v1141
    %v1245 = vunpack.c.l.b16 %v1142
    %v1246 = vunpack.c.l.b16 %v1143
    %v1247 = vunpack.c.l.b16 %v1144
    %v1248 = vunpack.c.l.b16 %v1145
    %v1249 = vunpack.c.l.b16 %v1146
    %v1250 = vunpack.c.l.b16 %v1147
    %v1251 = vunpack.c.l.b16 %v1148
    %v1252 = vunpack.c.l.b16 %v1149
    %v1253 = vunpack.c.l.b16 %v1150
    %v1254 = vunpack.c.l.b16 %v1151
    %v1255 = vunpack.c.l.b16 %v1152
    %v1256 = vunpack.c.l.b16 %v1153
    %v1257 = vunpack.c.l.b16 %v1154
    %v1258 = vunpack.c.l.b16 %v1155
    %v1259 = vunpack.c.l.b16 %v1156
    %v1260 = vunpack.c.l.b16 %v1157
    %v1261 = vpack.c.b16 %v1214, %v1213
    %v1262 = vpack.c.b16 %v1216, %v1215
    %v1263 = vpack.c.b16 %v1218, %v1217
    %v1264 = vpack.c.b16 %v1220, %v1219
    %v1265 = vpack.c.b16 %v1222, %v1221
    %v1266 = vpack.c.b16 %v1224, %v1223
    %v1267 = vpack.c.b16 %v1226, %v1225
    %v1268 = vpack.c.b16 %v1228, %v1227
    %v1269 = vpack.c.b16 %v1230, %v1229
    %v1270 = vpack.c.b16 %v1232, %v1231
    %v1271 = vpack.c.b16 %v1234, %v1233
    %v1272 = vpack.c.b16 %v1236, %v1235
    %v1273 = vpack.c.b16 %v1238, %v1237
    %v1274 = vpack.c.b16 %v1240, %v1239
    %v1275 = vpack.c.b16 %v1242, %v1241
    %v1276 = vpack.c.b16 %v1244, %v1243
    %v1277 = vpack.c.b16 %v1246, %v1245
    %v1278 = vpack.c.b16 %v1248, %v1247
    %v1279 = vpack.c.b16 %v1250, %v1249
    %v1280 = vpack.c.b16 %v1252, %v1251
    %v1281 = vpack.c.b16 %v1254, %v1253
    %v1282 = vpack.c.b16 %v1256, %v1255
    %v1283 = vpack.c.b16 %v1258, %v1257
    %v1284 = vpack.c.b16 %v1260, %v1259
    %1309 = vmatprep.subr.bf16.mxu0 0
    %1310 = vmatpush1.bf16.msra.mxu0 %v1261
    %1311 = vmatprep.subr.bf16.mxu0 0
    %1312 = vmatpush1.bf16.msra.mxu0 %v1262
    %1313 = vmatprep.subr.bf16.mxu0 0
    %1314 = vmatpush1.bf16.msra.mxu0 %v1263
    %1315 = vmatprep.subr.bf16.mxu0 0
    %1316 = vmatpush1.bf16.msra.mxu0 %v1264
    %1317 = vmatprep.subr.bf16.mxu0 0
    %1318 = vmatpush1.bf16.msra.mxu0 %v1265
    %1319 = vmatprep.subr.bf16.mxu0 0
    %1320 = vmatpush1.bf16.msra.mxu0 %v1266
    %1321 = vmatprep.subr.bf16.mxu0 0
    %1322 = vmatpush1.bf16.msra.mxu0 %v1267
    %1323 = vmatprep.subr.bf16.mxu0 0
    %1324 = vmatpush1.bf16.msra.mxu0 %v1268
    %1325 = vmatprep.subr.bf16.mxu0 0
    %1326 = vmatpush1.bf16.msra.mxu0 %v1269
    %1327 = vmatprep.subr.bf16.mxu0 0
    %1328 = vmatpush1.bf16.msra.mxu0 %v1270
    %1329 = vmatprep.subr.bf16.mxu0 0
    %1330 = vmatpush1.bf16.msra.mxu0 %v1271
    %1331 = vmatprep.subr.bf16.mxu0 0
    %1332 = vmatpush1.bf16.msra.mxu0 %v1272
    %1333 = vmatprep.subr.bf16.mxu0 0
    %1334 = vmatpush1.bf16.msra.mxu0 %v1273
    %1335 = vmatprep.subr.bf16.mxu0 0
    %1336 = vmatpush1.bf16.msra.mxu0 %v1274
    %1337 = vmatprep.subr.bf16.mxu0 0
    %1338 = vmatpush1.bf16.msra.mxu0 %v1275
    %1339 = vmatprep.subr.bf16.mxu0 0
    %1340 = vmatpush1.bf16.msra.mxu0 %v1276
    %1341 = vmatprep.mubr.bf16.mxu0 %v1108
    %1342 = vmatmul.mubr.bf16.gmra.mrb[0].mxu0 %v1107
    %v1343 = vpop.f32.mrb[0].mxu0
    %v1344 = vadd.f32 %v1163, %v1343
    %v1345 = vpop.f32.mrb[0].mxu0
    %v1346 = vpop.f32.mrb[0].mxu0
    %v1347 = vpop.f32.mrb[0].mxu0
    %1348 = vdwg.mxu0
    %1349 = vmatprep.subr.bf16.mxu0 0
    %1350 = vmatpush1.bf16.msra.mxu0 %v1277
    %1351 = vmatprep.subr.bf16.mxu0 0
    %1352 = vmatpush1.bf16.msra.mxu0 %v1278
    %1353 = vmatprep.subr.bf16.mxu0 0
    %1354 = vmatpush1.bf16.msra.mxu0 %v1279
    %1355 = vmatprep.subr.bf16.mxu0 0
    %1356 = vmatpush1.bf16.msra.mxu0 %v1280
    %1357 = vmatprep.subr.bf16.mxu0 0
    %1358 = vmatpush1.bf16.msra.mxu0 %v1281
    %1359 = vmatprep.subr.bf16.mxu0 0
    %1360 = vmatpush1.bf16.msra.mxu0 %v1282
    %1361 = vmatprep.subr.bf16.mxu0 0
    %1362 = vmatpush1.bf16.msra.mxu0 %v1283
    %1363 = vmatprep.subr.bf16.mxu0 0
    %1364 = vmatpush1.bf16.msra.mxu0 %v1284
    %1365 = vmatprep.subr.bf16.mxu0 0
    %1366 = vmatpush1.bf16.msra.mxu0 0
    %1367 = vmatprep.subr.bf16.mxu0 0
    %1368 = vmatpush1.bf16.msra.mxu0 0
    %1369 = vmatprep.subr.bf16.mxu0 0
    %1370 = vmatpush1.bf16.msra.mxu0 0
    %1371 = vmatprep.subr.bf16.mxu0 0
    %1372 = vmatpush1.bf16.msra.mxu0 0
    %1373 = vmatprep.subr.bf16.mxu0 0
    %1374 = vmatpush1.bf16.msra.mxu0 0
    %1375 = vmatprep.subr.bf16.mxu0 0
    %1376 = vmatpush1.bf16.msra.mxu0 0
    %1377 = vmatprep.subr.bf16.mxu0 0
    %1378 = vmatpush1.bf16.msra.mxu0 0
    %1379 = vmatprep.subr.bf16.mxu0 0
    %1380 = vmatpush1.bf16.msra.mxu0 0
    %1381 = vmatprep.mubr.bf16.mxu0 0
    %1382 = vmatmul.mubr.bf16.gmra.mrb[0].mxu0 %v1109
    %v1383 = vpop.f32.mrb[0].mxu0
    %v1384 = vadd.f32 %v1344, %v1383
    %v1385 = vpop.f32.mrb[0].mxu0
    %v1386 = vpop.f32.mrb[0].mxu0
    %v1387 = vpop.f32.mrb[0].mxu0
    %1388 = vdwg.mxu0
    %v1389 = vtanh.pop %v1384
    %1390 = vst [vmem:[#allocation7] sm:$0xff] %v1389
    // Predicated region
    $region38: #{tpu_custom_call.1} parent=1 // pred_check
      _
    $region39: #{tpu_custom_call.1} parent=1 // pred_check_branch
      %1392 = sbr.rel (0) target = $region41
    $region40: #{tpu_custom_call.1} parent=1 // pred_region
      %s1394 = ssub.s32 128, 128
      %1395 = vsyncadd [#allocation4], %s1394
      %s1397 = sshll.u32 [#allocation7], 4
      %s1398 = int_to_ptr.vmem [resolvable:$true] %s1397
      %1400 = dma.vmem_to_hbm [thread:$0]  %s1398, 128, %s7, [#allocation4]
    $region41: #{tpu_custom_call.1} parent=1 // pred_fallthru
      _
    // Predicated region
    $region42: #{tpu_custom_call.1} parent=1 // pred_check
      _
    $region43: #{tpu_custom_call.1} parent=1 // pred_check_branch
      %1402 = sbr.rel (0) target = $region45
    $region44: #{tpu_custom_call.1} parent=1 // pred_region
      %1403 = dma.done [#allocation4], 128
    $region45: #{tpu_custom_call.1} parent=1 // pred_fallthru
      _
    %1404 = vsyncpa [#allocation3], 1
    %1405 = vsyncpa [#allocation6], 1
    %1406 = vsyncpa [#allocation4], 1

</llo_original>
